<compile_context>
chip_gen: v7x
topology: tpu7x:2x2x1
jax: 0.10.0
libtpu: 0.0.40
codegen_flags: <defaults>
</compile_context>

<pallas_src>
import jax
import jax.numpy as jnp
from jax.experimental import pallas as pl
from jax.experimental.pallas import tpu as pltpu

FLOAT_MIN = float(jnp.finfo(jnp.float32).min)
_LANE = 128


def _round_up(x, m):
    return (x + m - 1) // m * m


def _fc_mask_kernel(x_ref, mask_ref,
                    w1_ref, b1_ref, w2_ref, b2_ref, wh_ref, bh_ref,
                    out_ref):
    x = x_ref[...].astype(jnp.float32)

    # Internal TorchFC: two tanh hidden layers (lane-padded to 128).
    h1 = jnp.tanh(
        jnp.dot(x, w1_ref[...], preferred_element_type=jnp.float32) + b1_ref[...]
    )
    h2 = jnp.tanh(
        jnp.dot(h1, w2_ref[...], preferred_element_type=jnp.float32) + b2_ref[...]
    )

    # Fused logits|value head: single MXU dot, single lane-dense output tile.
    head = jnp.dot(h2, wh_ref[...], preferred_element_type=jnp.float32) + bh_ref[...]

    # maskLogits for a 0/1 mask: additive 0 / FLOAT_MIN penalty on the first A
    # columns; value column and lane padding get +0 (no log, no EUP work).
    mask = mask_ref[...].astype(jnp.float32)
    penalty = jnp.where(mask > 0.0, jnp.float32(0.0), jnp.float32(FLOAT_MIN))
    pad = head.shape[1] - penalty.shape[1]
    penalty_wide = jnp.concatenate(
        [penalty, jnp.zeros((penalty.shape[0], pad), jnp.float32)], axis=1
    )

    out_ref[...] = head + penalty_wide


def custom_attention_wrapper_forward(obs, action_mask, params, *, batch_tile=None):
    """Pallas implementation of CustomAttentionWrapper.forward().

    obs:         [B, D_obs]  float32
    action_mask: [B, A]      float32 (0/1)
    returns (masked_logits [B, A], value [B, 1])
    """
    obs = jnp.asarray(obs, jnp.float32)
    action_mask = jnp.asarray(action_mask, jnp.float32)
    B, D = obs.shape
    A = action_mask.shape[1]
    H1 = params["w1"].shape[1]
    H2 = params["w2"].shape[1]

    # ---- host-side weight prep (constant-folded under jit): fuse value head,
    # ---- zero-pad every hidden/head dim to 128 lanes. tanh(0)=0 and zero
    # ---- padded weight rows keep the math exactly equivalent.
    H1p = _round_up(H1, _LANE)
    H2p = _round_up(H2, _LANE)
    Np = _round_up(A + 1, _LANE)

    w1 = jnp.pad(params["w1"].astype(jnp.float32), ((0, 0), (0, H1p - H1)))
    b1 = jnp.pad(params["b1"].astype(jnp.float32).reshape(1, H1),
                 ((0, 0), (0, H1p - H1)))
    w2 = jnp.pad(params["w2"].astype(jnp.float32),
                 ((0, H1p - H1), (0, H2p - H2)))
    b2 = jnp.pad(params["b2"].astype(jnp.float32).reshape(1, H2),
                 ((0, 0), (0, H2p - H2)))
    wh = jnp.concatenate(
        [params["wl"].astype(jnp.float32), params["wv"].astype(jnp.float32)], axis=1)
    bh = jnp.concatenate(
        [params["bl"].astype(jnp.float32).reshape(1, A),
         params["bv"].astype(jnp.float32).reshape(1, 1)], axis=1)
    wh = jnp.pad(wh, ((0, H2p - H2), (0, Np - (A + 1))))
    bh = jnp.pad(bh, ((0, 0), (0, Np - (A + 1))))

    # ---- batch tiling: multi-step grid so the Pallas pipeline overlaps obs DMA
    # ---- with compute (and shards across TensorCores on v7x).
    if batch_tile is None:
        tb = min(1024, _round_up(B, 8))
    else:
        tb = int(batch_tile)
    assert tb % 8 == 0, "batch_tile must be a multiple of 8"
    Bp = _round_up(B, tb)
    if Bp != B:
        obs = jnp.pad(obs, ((0, Bp - B), (0, 0)))
        action_mask = jnp.pad(action_mask, ((0, Bp - B), (0, 0)))
    grid = (Bp // tb,)

    def row_spec(n):
        return pl.BlockSpec((tb, n), lambda i: (i, 0))

    def const_spec(shape):
        return pl.BlockSpec(shape, lambda i: tuple(0 for _ in shape))

    out = pl.pallas_call(
        _fc_mask_kernel,
        out_shape=jax.ShapeDtypeStruct((Bp, Np), jnp.float32),
        grid_spec=pltpu.PrefetchScalarGridSpec(
            num_scalar_prefetch=0,
            grid=grid,
            in_specs=[
                row_spec(D),                # obs
                row_spec(A),                # action_mask
                const_spec((D, H1p)),       # w1
                const_spec((1, H1p)),       # b1
                const_spec((H1p, H2p)),     # w2
                const_spec((1, H2p)),       # b2
                const_spec((H2p, Np)),      # fused w_logits|w_value (padded)
                const_spec((1, Np)),        # fused b_logits|b_value (padded)
            ],
            out_specs=pl.BlockSpec((tb, Np), lambda i: (i, 0)),
        ),
        compiler_params=pltpu.CompilerParams(
            dimension_semantics=("parallel",),
        ),
    )(obs, action_mask, w1, b1, w2, b2, wh, bh)

    masked_logits = out[:B, :A]
    value = out[:B, A:A + 1]
    return masked_logits, value


def _reference_forward(obs, action_mask, params):
    h1 = jnp.tanh(obs @ params["w1"] + params["b1"])
    h2 = jnp.tanh(h1 @ params["w2"] + params["b2"])
    logits = h2 @ params["wl"] + params["bl"]
    value = h2 @ params["wv"] + params["bv"]
    inf_mask = jnp.maximum(jnp.log(action_mask), FLOAT_MIN)
    return logits + inf_mask, value


if __name__ == "__main__":
    # Small synthetic shapes consistent with the module:
    # batch=16, obs_dim=32, fcnet_hiddens=[32, 32], num_outputs (= mask dim)=8.
    # batch_tile=8 gives a 2-step grid so the pipelined / parallel path is used.
    B, D, H1, H2, A = 16, 32, 32, 32, 8

    key = jax.random.PRNGKey(0)
    k_obs, k_mask, k1, k2, k3, k4 = jax.random.split(key, 6)

    obs = jax.random.normal(k_obs, (B, D), dtype=jnp.float32)
    # Deterministic 0/1 action mask; guarantee at least one valid action per row.
    action_mask = (jax.random.uniform(k_mask, (B, A)) > 0.5).astype(jnp.float32)
    action_mask = action_mask.at[:, 0].set(1.0)

    scale = 0.1
    params = {
        "w1": scale * jax.random.normal(k1, (D, H1), dtype=jnp.float32),
        "b1": jnp.zeros((1, H1), dtype=jnp.float32),
        "w2": scale * jax.random.normal(k2, (H1, H2), dtype=jnp.float32),
        "b2": jnp.zeros((1, H2), dtype=jnp.float32),
        "wl": scale * jax.random.normal(k3, (H2, A), dtype=jnp.float32),
        "bl": jnp.zeros((1, A), dtype=jnp.float32),
        "wv": scale * jax.random.normal(k4, (H2, 1), dtype=jnp.float32),
        "bv": jnp.zeros((1, 1), dtype=jnp.float32),
    }

    fwd = jax.jit(
        lambda o, m: custom_attention_wrapper_forward(o, m, params, batch_tile=8)
    )
    masked_logits, value = fwd(obs, action_mask)
    jax.block_until_ready((masked_logits, value))

    ref_logits, ref_value = _reference_forward(obs, action_mask, params)

    # Compare only where the mask is valid (invalid entries are ~FLOAT_MIN/-inf
    # in both kernel and reference).
    valid = action_mask > 0
    assert jnp.allclose(jnp.where(valid, masked_logits, 0.0),
                        jnp.where(valid, ref_logits, 0.0),
                        atol=1e-4, rtol=1e-4)
    assert bool(jnp.all(jnp.where(~valid, masked_logits <= FLOAT_MIN / 2, True)))
    assert jnp.allclose(value, ref_value, atol=1e-4, rtol=1e-4)
    assert masked_logits.shape == (B, A) and value.shape == (B, 1)

    # TODO(synk): RLlib glue (SampleBatch handling, obs_flat flattening, state
    # passthrough, debug prints) has no kernel-level equivalent and is omitted.
    print("KERNEL_OK")
</pallas_src>

<mosaic_0001>
module attributes {stable_mosaic.version = 11 : i64} {
  func.func @_fc_mask_kernel(%arg0: i32, %arg1: memref<8x32xf32, #tpu.memory_space<vmem>>, %arg2: memref<8x8xf32, #tpu.memory_space<vmem>>, %arg3: memref<32x128xf32, #tpu.memory_space<vmem>>, %arg4: memref<1x128xf32, #tpu.memory_space<vmem>>, %arg5: memref<128x128xf32, #tpu.memory_space<vmem>>, %arg6: memref<1x128xf32, #tpu.memory_space<vmem>>, %arg7: memref<128x128xf32, #tpu.memory_space<vmem>>, %arg8: memref<1x128xf32, #tpu.memory_space<vmem>>, %arg9: memref<8x128xf32, #tpu.memory_space<vmem>>) attributes {dimension_semantics = [#tpu.dimension_semantics<parallel>], iteration_bounds = array<i64: 2>, scalar_prefetch = 0 : i64, scratch_operands = 0 : i64, tpu.core_type = #tpu.core_type<tc>, window_params = [{transform_indices = @transform_0, window_bounds = array<i64: 8, 32>}, {transform_indices = @transform_1, window_bounds = array<i64: 8, 8>}, {pipeline_mode = #tpu.pipeline_mode<synchronous>, transform_indices = @transform_2, window_bounds = array<i64: 32, 128>}, {pipeline_mode = #tpu.pipeline_mode<synchronous>, transform_indices = @transform_3, window_bounds = array<i64: 1, 128>}, {pipeline_mode = #tpu.pipeline_mode<synchronous>, transform_indices = @transform_4, window_bounds = array<i64: 128, 128>}, {pipeline_mode = #tpu.pipeline_mode<synchronous>, transform_indices = @transform_5, window_bounds = array<i64: 1, 128>}, {pipeline_mode = #tpu.pipeline_mode<synchronous>, transform_indices = @transform_6, window_bounds = array<i64: 128, 128>}, {pipeline_mode = #tpu.pipeline_mode<synchronous>, transform_indices = @transform_7, window_bounds = array<i64: 1, 128>}, {transform_indices = @transform_8, window_bounds = array<i64: 8, 128>}]} {
    %c0 = arith.constant 0 : index
    %c0_0 = arith.constant 0 : index
    %0 = vector.load %arg1[%c0, %c0_0] : memref<8x32xf32, #tpu.memory_space<vmem>>, vector<8x32xf32>
    %c0_1 = arith.constant 0 : index
    %c0_2 = arith.constant 0 : index
    %1 = vector.load %arg3[%c0_1, %c0_2] : memref<32x128xf32, #tpu.memory_space<vmem>>, vector<32x128xf32>
    %cst = arith.constant dense<0.000000e+00> : vector<8x128xf32>
    %2 = tpu.matmul %0, %1, %cst {dimension_numbers = #tpu.dot_dimension_numbers<[1], [0], [0], [1], [0, 0, 1, 1], [], []>} : vector<8x32xf32>, vector<32x128xf32>, vector<8x128xf32> -> vector<8x128xf32>
    %c0_3 = arith.constant 0 : index
    %c0_4 = arith.constant 0 : index
    %3 = vector.load %arg4[%c0_3, %c0_4] : memref<1x128xf32, #tpu.memory_space<vmem>>, vector<1x128xf32>
    %4 = vector.broadcast %3 : vector<1x128xf32> to vector<8x128xf32>
    %5 = arith.addf %2, %4 : vector<8x128xf32>
    %6 = math.tanh %5 : vector<8x128xf32>
    %c0_5 = arith.constant 0 : index
    %c0_6 = arith.constant 0 : index
    %7 = vector.load %arg5[%c0_5, %c0_6] : memref<128x128xf32, #tpu.memory_space<vmem>>, vector<128x128xf32>
    %cst_7 = arith.constant dense<0.000000e+00> : vector<8x128xf32>
    %8 = tpu.matmul %6, %7, %cst_7 {dimension_numbers = #tpu.dot_dimension_numbers<[1], [0], [0], [1], [0, 0, 1, 1], [], []>} : vector<8x128xf32>, vector<128x128xf32>, vector<8x128xf32> -> vector<8x128xf32>
    %c0_8 = arith.constant 0 : index
    %c0_9 = arith.constant 0 : index
    %9 = vector.load %arg6[%c0_8, %c0_9] : memref<1x128xf32, #tpu.memory_space<vmem>>, vector<1x128xf32>
    %10 = vector.broadcast %9 : vector<1x128xf32> to vector<8x128xf32>
    %11 = arith.addf %8, %10 : vector<8x128xf32>
    %12 = math.tanh %11 : vector<8x128xf32>
    %c0_10 = arith.constant 0 : index
    %c0_11 = arith.constant 0 : index
    %13 = vector.load %arg7[%c0_10, %c0_11] : memref<128x128xf32, #tpu.memory_space<vmem>>, vector<128x128xf32>
    %cst_12 = arith.constant dense<0.000000e+00> : vector<8x128xf32>
    %14 = tpu.matmul %12, %13, %cst_12 {dimension_numbers = #tpu.dot_dimension_numbers<[1], [0], [0], [1], [0, 0, 1, 1], [], []>} : vector<8x128xf32>, vector<128x128xf32>, vector<8x128xf32> -> vector<8x128xf32>
    %c0_13 = arith.constant 0 : index
    %c0_14 = arith.constant 0 : index
    %15 = vector.load %arg8[%c0_13, %c0_14] : memref<1x128xf32, #tpu.memory_space<vmem>>, vector<1x128xf32>
    %16 = vector.broadcast %15 : vector<1x128xf32> to vector<8x128xf32>
    %17 = arith.addf %14, %16 : vector<8x128xf32>
    %c0_15 = arith.constant 0 : index
    %c0_16 = arith.constant 0 : index
    %18 = vector.load %arg2[%c0_15, %c0_16] : memref<8x8xf32, #tpu.memory_space<vmem>>, vector<8x8xf32>
    %cst_17 = arith.constant 0.000000e+00 : f32
    %19 = vector.broadcast %cst_17 : f32 to vector<8x8xf32>
    %20 = arith.cmpf ogt, %18, %19 : vector<8x8xf32>
    %cst_18 = arith.constant 0.000000e+00 : f32
    %cst_19 = arith.constant -3.40282347E+38 : f32
    %21 = vector.broadcast %cst_18 : f32 to vector<8x8xf32>
    %22 = vector.broadcast %cst_19 : f32 to vector<8x8xf32>
    %23 = arith.select %20, %21, %22 : vector<8x8xi1>, vector<8x8xf32>
    %cst_20 = arith.constant 0.000000e+00 : f32
    %24 = vector.broadcast %cst_20 : f32 to vector<8x120xf32>
    %25 = tpu.concatenate %23, %24 in 1 : vector<8x8xf32>, vector<8x120xf32> -> vector<8x128xf32>
    %26 = arith.addf %17, %25 : vector<8x128xf32>
    %c0_21 = arith.constant 0 : index
    %c0_22 = arith.constant 0 : index
    %27 = vector.load %arg9[%c0_21, %c0_22] : memref<8x128xf32, #tpu.memory_space<vmem>>, vector<8x128xf32>
    tpu.vector_store %arg9[%c0_21, %c0_22], %26 {strides = array<i32>} : memref<8x128xf32, #tpu.memory_space<vmem>>, vector<8x128xf32>,
    return
  }
  func.func @transform_0(%arg0: i32) -> (i32, i32) {
    %c0_i32 = arith.constant 0 : i32
    %c0_i32_0 = arith.constant 0 : i32
    return %arg0, %c0_i32 : i32, i32
  }
  func.func @transform_1(%arg0: i32) -> (i32, i32) {
    %c0_i32 = arith.constant 0 : i32
    %c0_i32_0 = arith.constant 0 : i32
    return %arg0, %c0_i32 : i32, i32
  }
  func.func @transform_2(%arg0: i32) -> (i32, i32) {
    %c0_i32 = arith.constant 0 : i32
    %c0_i32_0 = arith.constant 0 : i32
    %c0_i32_1 = arith.constant 0 : i32
    return %c0_i32, %c0_i32_0 : i32, i32
  }
  func.func @transform_3(%arg0: i32) -> (i32, i32) {
    %c0_i32 = arith.constant 0 : i32
    %c0_i32_0 = arith.constant 0 : i32
    %c0_i32_1 = arith.constant 0 : i32
    return %c0_i32, %c0_i32_0 : i32, i32
  }
  func.func @transform_4(%arg0: i32) -> (i32, i32) {
    %c0_i32 = arith.constant 0 : i32
    %c0_i32_0 = arith.constant 0 : i32
    %c0_i32_1 = arith.constant 0 : i32
    return %c0_i32, %c0_i32_0 : i32, i32
  }
  func.func @transform_5(%arg0: i32) -> (i32, i32) {
    %c0_i32 = arith.constant 0 : i32
    %c0_i32_0 = arith.constant 0 : i32
    %c0_i32_1 = arith.constant 0 : i32
    return %c0_i32, %c0_i32_0 : i32, i32
  }
  func.func @transform_6(%arg0: i32) -> (i32, i32) {
    %c0_i32 = arith.constant 0 : i32
    %c0_i32_0 = arith.constant 0 : i32
    %c0_i32_1 = arith.constant 0 : i32
    return %c0_i32, %c0_i32_0 : i32, i32
  }
  func.func @transform_7(%arg0: i32) -> (i32, i32) {
    %c0_i32 = arith.constant 0 : i32
    %c0_i32_0 = arith.constant 0 : i32
    %c0_i32_1 = arith.constant 0 : i32
    return %c0_i32, %c0_i32_0 : i32, i32
  }
  func.func @transform_8(%arg0: i32) -> (i32, i32) {
    %c0_i32 = arith.constant 0 : i32
    %c0_i32_0 = arith.constant 0 : i32
    return %arg0, %c0_i32 : i32, i32
  }
}

</mosaic_0001>

<llo_original>
// kernel: _lambda_.1
$region0: #{_lambda_.1}
  #allocation0 [shape = 'u32[]', space=smem, size = 0x4, offset = 0x4, fixed_abs, tag = 'smem constant byte address 0x4 - core index']
  #allocation1 [shape = 'u32[144,128]{1,0:T(1,128)}', space=vmem, size = 0x12000, scoped, tag = 'internal scratch']
  %s0 = inlined_call_operand.vmem [shape: f32[16,32], index: 0, kind: input, shape index: {}]
  %s1 = inlined_call_operand.vmem [shape: f32[16,8], index: 1, kind: input, shape index: {}]
  %s2 = inlined_call_operand.vmem [shape: f32[32,128], index: 2, kind: input, shape index: {}]
  %s3 = inlined_call_operand.vmem [shape: f32[1,128], index: 3, kind: input, shape index: {}, may-alias: {3,5}]
  %s4 = inlined_call_operand.hbm [shape: f32[128,128], index: 4, kind: input, shape index: {}]
  %s5 = inlined_call_operand.vmem [shape: f32[1,128], index: 5, kind: input, shape index: {}, may-alias: {3,5}]
  %s6 = inlined_call_operand.hbm [shape: f32[128,128], index: 6, kind: input, shape index: {}]
  %s7 = inlined_call_operand.vmem [shape: f32[1,128], index: 7, kind: input, shape index: {}]
  %s8 = inlined_call_operand.vmem [shape: f32[16,128], index: 8, kind: output, shape index: {}]
  %s9 = sld [smem:[#allocation0]]
  $region73: #{_lambda_.1} parent=0
    _
  %s11 = ssub.s32 1, %s9
  %s12 = scalar_select 0, %s11, %s9
  $region1: #{_lambda_.1} parent=0
    #allocation2 [shape = 'u8[65536]{0}', space=vmem, size = 0x10000, scoped, tag = 'input window, operand 4, single buffered']
    #allocation3 [shape = 's32[2]{0}', space=sflag, size = 0x8, scoped, tag = 'scoped memory for _lambda_.1']
    #allocation4 [shape = 'u8[65536]{0}', space=vmem, size = 0x10000, scoped, tag = 'input window, operand 6, single buffered']
    #allocation5 [shape = 's32[1]{0}', space=sflag, size = 0x4, scoped, tag = 'scoped memory for _lambda_.1']
    %13 = vsyncpa [#allocation3], 0
    %14 = vsyncpa [#allocation5], 0
    loop: start=0, step=1, limit=4
    $region2: #{_lambda_.1} parent=1 // loop_pre_header
      _
    $region3: #{_lambda_.1} parent=1 // loop_header
      %s16 = sphi 0, %s20
      %p17 = scmp.ge.s32.totalorder %s16, 4
      %s26 = sphi 0, %s28
      %s29 = sphi 0, %s26
      %s30 = sphi 0, %s29
      %s46 = sphi 0, %s30
      %s52 = sphi 0, %s54
      %s55 = sphi 0, %s52
      %s56 = sphi 0, %s55
      %s72 = sphi 0, %s56
      %s76 = sphi 0, %s76
      %s78 = sphi 0, %s76
      %s79 = sphi 0, %s78
      %s93 = sphi 0, %s79
      %s97 = sphi 0, %s97
      %s99 = sphi 0, %s97
      %s100 = sphi 0, %s99
      %s114 = sphi 0, %s100
      %s118 = sphi 0, %s118
      %s120 = sphi 0, %s118
      %s121 = sphi 0, %s120
      %s135 = sphi 0, %s121
      %s139 = sphi 0, %s139
      %s141 = sphi 0, %s139
      %s142 = sphi 0, %s141
      %s156 = sphi 0, %s142
      %s160 = sphi 0, %s160
      %s162 = sphi 0, %s160
      %s163 = sphi 0, %s162
      %s177 = sphi 0, %s163
      %s181 = sphi 0, %s181
      %s183 = sphi 0, %s181
      %s184 = sphi 0, %s183
      %s198 = sphi 0, %s184
      %s204 = sphi 0, %s206
      %s207 = sphi 0, %s204
      %s208 = sphi 0, %s207
      %s224 = sphi 0, %s208
    $region4: #{_lambda_.1} parent=1 // loop_header_branch
      %19 = sbr.rel (%p17) target = $region8
    $region5: #{_lambda_.1} parent=1 // loop_body
      %s21 = ssub.s32 %s16, 1
      %s22 = ssub.s32 %s16, 2
      %s23 = sadd.s32 %s16, 1
      %s24 = ssub.s32 %s16, %s23
      %p25 = scmp.eq.s32.totalorder %s24, 0
      %s27 = sadd.s32 %s26, 1
      %s28 = scalar_select %p25, %s26, %s27
      %p31 = pneg %p25
      %p32 = scmp.eq.s32.totalorder %s16, 1
      %p33 = por %p31, %p32
      %p34 = scmp.ne.s32.totalorder %s26, %s29
      %p35 = scmp.eq.s32.totalorder %s16, 0
      %p36 = por %p34, %p35
      %p37 = scmp.ne.s32.totalorder %s26, %s29
      %p38 = scmp.eq.s32.totalorder %s21, 1
      %p39 = por %p37, %p38
      %p40 = scmp.ne.s32.totalorder %s29, %s30
      %p41 = scmp.eq.s32.totalorder %s21, 0
      %p42 = por %p40, %p41
      %p43 = scmp.ne.s32.totalorder %s29, %s30
      %p44 = scmp.eq.s32.totalorder %s22, 1
      %p45 = por %p43, %p44
      %p47 = scmp.ne.s32.totalorder %s30, %s46
      %p48 = scmp.eq.s32.totalorder %s22, 0
      %p49 = por %p47, %p48
      %s50 = ssub.s32 %s16, %s23
      %p51 = scmp.eq.s32.totalorder %s50, 0
      %s53 = sadd.s32 %s52, 1
      %s54 = scalar_select %p51, %s52, %s53
      %p57 = pneg %p51
      %p58 = scmp.eq.s32.totalorder %s16, 1
      %p59 = por %p57, %p58
      %p60 = scmp.ne.s32.totalorder %s52, %s55
      %p61 = scmp.eq.s32.totalorder %s16, 0
      %p62 = por %p60, %p61
      %p63 = scmp.ne.s32.totalorder %s52, %s55
      %p64 = scmp.eq.s32.totalorder %s21, 1
      %p65 = por %p63, %p64
      %p66 = scmp.ne.s32.totalorder %s55, %s56
      %p67 = scmp.eq.s32.totalorder %s21, 0
      %p68 = por %p66, %p67
      %p69 = scmp.ne.s32.totalorder %s55, %s56
      %p70 = scmp.eq.s32.totalorder %s22, 1
      %p71 = por %p69, %p70
      %p73 = scmp.ne.s32.totalorder %s56, %s72
      %p74 = scmp.eq.s32.totalorder %s22, 0
      %p75 = por %p73, %p74
      %s77 = sadd.s32 %s76, 1
      %p80 = scmp.eq.s32.totalorder %s16, 1
      %p81 = scmp.ne.s32.totalorder %s76, %s78
      %p82 = scmp.eq.s32.totalorder %s16, 0
      %p83 = por %p81, %p82
      %p84 = scmp.ne.s32.totalorder %s76, %s78
      %p85 = scmp.eq.s32.totalorder %s21, 1
      %p86 = por %p84, %p85
      %p87 = scmp.ne.s32.totalorder %s78, %s79
      %p88 = scmp.eq.s32.totalorder %s21, 0
      %p89 = por %p87, %p88
      %p90 = scmp.ne.s32.totalorder %s78, %s79
      %p91 = scmp.eq.s32.totalorder %s22, 1
      %p92 = por %p90, %p91
      %p94 = scmp.ne.s32.totalorder %s79, %s93
      %p95 = scmp.eq.s32.totalorder %s22, 0
      %p96 = por %p94, %p95
      %s98 = sadd.s32 %s97, 1
      %p101 = scmp.eq.s32.totalorder %s16, 1
      %p102 = scmp.ne.s32.totalorder %s97, %s99
      %p103 = scmp.eq.s32.totalorder %s16, 0
      %p104 = por %p102, %p103
      %p105 = scmp.ne.s32.totalorder %s97, %s99
      %p106 = scmp.eq.s32.totalorder %s21, 1
      %p107 = por %p105, %p106
      %p108 = scmp.ne.s32.totalorder %s99, %s100
      %p109 = scmp.eq.s32.totalorder %s21, 0
      %p110 = por %p108, %p109
      %p111 = scmp.ne.s32.totalorder %s99, %s100
      %p112 = scmp.eq.s32.totalorder %s22, 1
      %p113 = por %p111, %p112
      %p115 = scmp.ne.s32.totalorder %s100, %s114
      %p116 = scmp.eq.s32.totalorder %s22, 0
      %p117 = por %p115, %p116
      %s119 = sadd.s32 %s118, 1
      %p122 = scmp.eq.s32.totalorder %s16, 1
      %p123 = scmp.ne.s32.totalorder %s118, %s120
      %p124 = scmp.eq.s32.totalorder %s16, 0
      %p125 = por %p123, %p124
      %p126 = scmp.ne.s32.totalorder %s118, %s120
      %p127 = scmp.eq.s32.totalorder %s21, 1
      %p128 = por %p126, %p127
      %p129 = scmp.ne.s32.totalorder %s120, %s121
      %p130 = scmp.eq.s32.totalorder %s21, 0
      %p131 = por %p129, %p130
      %p132 = scmp.ne.s32.totalorder %s120, %s121
      %p133 = scmp.eq.s32.totalorder %s22, 1
      %p134 = por %p132, %p133
      %p136 = scmp.ne.s32.totalorder %s121, %s135
      %p137 = scmp.eq.s32.totalorder %s22, 0
      %p138 = por %p136, %p137
      %s140 = sadd.s32 %s139, 1
      %p143 = scmp.eq.s32.totalorder %s16, 1
      %p144 = scmp.ne.s32.totalorder %s139, %s141
      %p145 = scmp.eq.s32.totalorder %s16, 0
      %p146 = por %p144, %p145
      %p147 = scmp.ne.s32.totalorder %s139, %s141
      %p148 = scmp.eq.s32.totalorder %s21, 1
      %p149 = por %p147, %p148
      %p150 = scmp.ne.s32.totalorder %s141, %s142
      %p151 = scmp.eq.s32.totalorder %s21, 0
      %p152 = por %p150, %p151
      %p153 = scmp.ne.s32.totalorder %s141, %s142
      %p154 = scmp.eq.s32.totalorder %s22, 1
      %p155 = por %p153, %p154
      %p157 = scmp.ne.s32.totalorder %s142, %s156
      %p158 = scmp.eq.s32.totalorder %s22, 0
      %p159 = por %p157, %p158
      %s161 = sadd.s32 %s160, 1
      %p164 = scmp.eq.s32.totalorder %s16, 1
      %p165 = scmp.ne.s32.totalorder %s160, %s162
      %p166 = scmp.eq.s32.totalorder %s16, 0
      %p167 = por %p165, %p166
      %p168 = scmp.ne.s32.totalorder %s160, %s162
      %p169 = scmp.eq.s32.totalorder %s21, 1
      %p170 = por %p168, %p169
      %p171 = scmp.ne.s32.totalorder %s162, %s163
      %p172 = scmp.eq.s32.totalorder %s21, 0
      %p173 = por %p171, %p172
      %p174 = scmp.ne.s32.totalorder %s162, %s163
      %p175 = scmp.eq.s32.totalorder %s22, 1
      %p176 = por %p174, %p175
      %p178 = scmp.ne.s32.totalorder %s163, %s177
      %p179 = scmp.eq.s32.totalorder %s22, 0
      %p180 = por %p178, %p179
      %s182 = sadd.s32 %s181, 1
      %p185 = scmp.eq.s32.totalorder %s16, 1
      %p186 = scmp.ne.s32.totalorder %s181, %s183
      %p187 = scmp.eq.s32.totalorder %s16, 0
      %p188 = por %p186, %p187
      %p189 = scmp.ne.s32.totalorder %s181, %s183
      %p190 = scmp.eq.s32.totalorder %s21, 1
      %p191 = por %p189, %p190
      %p192 = scmp.ne.s32.totalorder %s183, %s184
      %p193 = scmp.eq.s32.totalorder %s21, 0
      %p194 = por %p192, %p193
      %p195 = scmp.ne.s32.totalorder %s183, %s184
      %p196 = scmp.eq.s32.totalorder %s22, 1
      %p197 = por %p195, %p196
      %p199 = scmp.ne.s32.totalorder %s184, %s198
      %p200 = scmp.eq.s32.totalorder %s22, 0
      %p201 = por %p199, %p200
      %s202 = ssub.s32 %s16, %s23
      %p203 = scmp.eq.s32.totalorder %s202, 0
      %s205 = sadd.s32 %s204, 1
      %s206 = scalar_select %p203, %s204, %s205
      %p209 = pneg %p203
      %p210 = scmp.eq.s32.totalorder %s16, 1
      %p211 = por %p209, %p210
      %p212 = scmp.ne.s32.totalorder %s204, %s207
      %p213 = scmp.eq.s32.totalorder %s16, 0
      %p214 = por %p212, %p213
      %p215 = scmp.ne.s32.totalorder %s204, %s207
      %p216 = scmp.eq.s32.totalorder %s21, 1
      %p217 = por %p215, %p216
      %p218 = scmp.ne.s32.totalorder %s207, %s208
      %p219 = scmp.eq.s32.totalorder %s21, 0
      %p220 = por %p218, %p219
      %p221 = scmp.ne.s32.totalorder %s207, %s208
      %p222 = scmp.eq.s32.totalorder %s22, 1
      %p223 = por %p221, %p222
      %p225 = scmp.ne.s32.totalorder %s208, %s224
      %p226 = scmp.eq.s32.totalorder %s22, 0
      %p227 = por %p225, %p226
      %p228 = scmp.le.s32.totalorder 1, %s16
      %p229 = scmp.lt.s32.totalorder %s16, 3
      %p230 = pnand %p228, %p229
      %p231 = pneg %p230
      // Predicated region
      $region9: #{_lambda_.1} parent=5 // pred_check
        _
      $region10: #{_lambda_.1} parent=5 // pred_check_branch
        %233 = sbr.rel (%p230) target = $region12
      $region11: #{_lambda_.1} parent=5 // pred_region
        %s234 = ssub.s32 %s16, 1
        // Predicated region
        $region13: #{_lambda_.1} parent=11 // pred_check
          %p235 = pneg %p89
        $region14: #{_lambda_.1} parent=11 // pred_check_branch
          %237 = sbr.rel (%p235) target = $region16
        $region15: #{_lambda_.1} parent=11 // pred_region
          _
        $region16: #{_lambda_.1} parent=11 // pred_fallthru
          _
        // Predicated region
        $region17: #{_lambda_.1} parent=11 // pred_check
          %p238 = pneg %p110
        $region18: #{_lambda_.1} parent=11 // pred_check_branch
          %240 = sbr.rel (%p238) target = $region20
        $region19: #{_lambda_.1} parent=11 // pred_region
          _
        $region20: #{_lambda_.1} parent=11 // pred_fallthru
          _
        // Predicated region
        $region21: #{_lambda_.1} parent=11 // pred_check
          %p241 = pneg %p131
        $region22: #{_lambda_.1} parent=11 // pred_check_branch
          %243 = sbr.rel (%p241) target = $region24
        $region23: #{_lambda_.1} parent=11 // pred_region
          %s245 = ssub.s32 2048, 2048
          %246 = vsyncadd [#allocation3], %s245
          %s247 = sshll.u32 [#allocation2], 4
          %s248 = int_to_ptr.vmem [resolvable:$true] %s247
          %253 = dma.hbm_to_vmem [thread:$0]  %s4, 2048, %s248, [#allocation3], 128, 128, 8
        $region24: #{_lambda_.1} parent=11 // pred_fallthru
          _
        // Predicated region
        $region25: #{_lambda_.1} parent=11 // pred_check
          %p254 = pneg %p152
        $region26: #{_lambda_.1} parent=11 // pred_check_branch
          %256 = sbr.rel (%p254) target = $region28
        $region27: #{_lambda_.1} parent=11 // pred_region
          _
        $region28: #{_lambda_.1} parent=11 // pred_fallthru
          _
        // Predicated region
        $region29: #{_lambda_.1} parent=11 // pred_check
          %p257 = pneg %p173
        $region30: #{_lambda_.1} parent=11 // pred_check_branch
          %259 = sbr.rel (%p257) target = $region32
        $region31: #{_lambda_.1} parent=11 // pred_region
          %s261 = ssub.s32 2048, 2048
          %262 = vsyncadd [#allocation5], %s261
          %s263 = sshll.u32 [#allocation4], 4
          %s264 = int_to_ptr.vmem [resolvable:$true] %s263
          %269 = dma.hbm_to_vmem [thread:$0]  %s6, 2048, %s264, [#allocation5], 128, 128, 8
        $region32: #{_lambda_.1} parent=11 // pred_fallthru
          _
        // Predicated region
        $region33: #{_lambda_.1} parent=11 // pred_check
          %p270 = pneg %p194
        $region34: #{_lambda_.1} parent=11 // pred_check_branch
          %272 = sbr.rel (%p270) target = $region36
        $region35: #{_lambda_.1} parent=11 // pred_region
          _
        $region36: #{_lambda_.1} parent=11 // pred_fallthru
          _
      $region12: #{_lambda_.1} parent=5 // pred_fallthru
        _
      %p273 = scmp.lt.s32.totalorder %s16, 2
      // Predicated region
      $region37: #{_lambda_.1} parent=5 // pred_check
        %p274 = pneg %p273
      $region38: #{_lambda_.1} parent=5 // pred_check_branch
        %276 = sbr.rel (%p274) target = $region40
      $region39: #{_lambda_.1} parent=5 // pred_region
        // Predicated region
        $region41: #{_lambda_.1} parent=39 // pred_check
          %p277 = pneg %p36
        $region42: #{_lambda_.1} parent=39 // pred_check_branch
          %279 = sbr.rel (%p277) target = $region44
        $region43: #{_lambda_.1} parent=39 // pred_region
          %p280 = scmp.lt.s32.totalorder %s16, 1
          %s281 = scalar_select %p280, %s16, 1
          %s282 = smul.addr %s281, 8
          %s283 = scalar_lea.vmem %s0, %s282
        $region44: #{_lambda_.1} parent=39 // pred_fallthru
          _
        // Predicated region
        $region45: #{_lambda_.1} parent=39 // pred_check
          %p284 = pneg %p62
        $region46: #{_lambda_.1} parent=39 // pred_check_branch
          %286 = sbr.rel (%p284) target = $region48
        $region47: #{_lambda_.1} parent=39 // pred_region
          %p287 = scmp.lt.s32.totalorder %s16, 1
          %s288 = scalar_select %p287, %s16, 1
          %s289 = smul.addr %s288, 8
          %s290 = scalar_lea.vmem %s1, %s289
        $region48: #{_lambda_.1} parent=39 // pred_fallthru
          _
      $region40: #{_lambda_.1} parent=5 // pred_fallthru
        _
      %p291 = scmp.le.s32.totalorder 1, %s16
      %p292 = scmp.lt.s32.totalorder %s16, 3
      %p293 = pnand %p291, %p292
      %p294 = pneg %p293
      // Predicated region
      $region49: #{_lambda_.1} parent=5 // pred_check
        _
      $region50: #{_lambda_.1} parent=5 // pred_check_branch
        %296 = sbr.rel (%p293) target = $region52
      $region51: #{_lambda_.1} parent=5 // pred_region
        %s297 = ssub.s32 %s16, 1
        // Predicated region
        $region53: #{_lambda_.1} parent=51 // pred_check
          %p298 = pneg %p131
        $region54: #{_lambda_.1} parent=51 // pred_check_branch
          %300 = sbr.rel (%p298) target = $region56
        $region55: #{_lambda_.1} parent=51 // pred_region
          %301 = dma.done [#allocation3], 2048
        $region56: #{_lambda_.1} parent=51 // pred_fallthru
          _
        // Predicated region
        $region57: #{_lambda_.1} parent=51 // pred_check
          %p302 = pneg %p173
        $region58: #{_lambda_.1} parent=51 // pred_check_branch
          %304 = sbr.rel (%p302) target = $region60
        $region59: #{_lambda_.1} parent=51 // pred_region
          %305 = dma.done [#allocation5], 2048
        $region60: #{_lambda_.1} parent=51 // pred_fallthru
          _
        %p306 = scmp.lt.s32.totalorder %s21, 1
        %s307 = scalar_select %p306, %s21, 1
        %s308 = smul.addr %s307, 8
        %s309 = scalar_lea.vmem %s0, %s308
        %p310 = pneg %p42
        %p311 = pneg %p39
        %p312 = scmp.lt.s32.totalorder %s21, 1
        %s313 = scalar_select %p312, %s21, 1
        %s314 = smul.addr %s313, 8
        %s315 = scalar_lea.vmem %s1, %s314
        %p316 = pneg %p68
        %p317 = pneg %p65
        %p318 = pneg %p89
        %p319 = pneg %p86
        %p320 = pneg %p110
        %p321 = pneg %p107
        %p322 = pneg %p131
        %p323 = pneg %p128
        %p324 = pneg %p152
        %p325 = pneg %p149
        %p326 = pneg %p173
        %p327 = pneg %p170
        %p328 = pneg %p194
        %p329 = pneg %p191
        %p330 = pneg %p220
        %p331 = pneg %p217
        %p332 = scmp.lt.s32.totalorder %s21, 1
        %s333 = scalar_select %p332, %s21, 1
        %s334 = smul.addr %s333, 8
        %s335 = scalar_lea.vmem %s8, %s334
        %p336 = scmp.lt.s32.totalorder %s21, 1
        %s337 = scalar_select %p336, %s21, 1
        %s338 = smul.addr %s337, 8
        %s339 = scalar_lea.vmem %s0, %s338
        %p340 = scmp.lt.s32.totalorder %s21, 1
        %s341 = scalar_select %p340, %s21, 1
        %s342 = smul.addr %s341, 8
        %s343 = scalar_lea.vmem %s1, %s342
        %p344 = scmp.lt.s32.totalorder %s21, 1
        %s345 = scalar_select %p344, %s21, 1
        %s346 = smul.addr %s345, 8
        %s347 = scalar_lea.vmem %s8, %s346
        %v348 = vld [vmem:[%s339] sm:$0xff]
        %v349 = vld [vmem:[%s2] sm:$0xff]
        %v350 = vld [vmem:[%s2 + $0x8] sm:$0xff]
        %v351 = vld [vmem:[%s2 + $0x10] sm:$0xff]
        %v352 = vld [vmem:[%s2 + $0x18] sm:$0xff]
        %v353 = vld [vmem:[%s3] sm:$0x1]
        %v355 = vlaneseq
        %v356 = vshrl.u32 %v355, 7
        %v357 = vsub.s32 0, %v356
        %v358 = vrot.slane %v353, %v357
        %vm360 = vcmask 261120
        %v362 = vsel %vm360, %v348, 0
        %364 = vmatprep.subr.mxu0 0.0
        %365 = vmatpush1.msra.mxu0 %v349
        %366 = vmatprep.subr.mxu0 0.0
        %367 = vmatpush1.msra.mxu0 %v350
        %368 = vmatprep.subr.mxu0 0.0
        %369 = vmatpush1.msra.mxu0 %v351
        %370 = vmatprep.subr.mxu0 0.0
        %371 = vmatpush1.msra.mxu0 %v352
        %372 = vmatprep.subr.mxu0 0.0
        %373 = vmatpush1.msra.mxu0 0.0
        %374 = vmatprep.subr.mxu0 0.0
        %375 = vmatpush1.msra.mxu0 0.0
        %376 = vmatprep.subr.mxu0 0.0
        %377 = vmatpush1.msra.mxu0 0.0
        %378 = vmatprep.subr.mxu0 0.0
        %379 = vmatpush1.msra.mxu0 0.0
        %380 = vmatprep.subr.mxu0 0.0
        %381 = vmatpush1.msra.mxu0 0.0
        %382 = vmatprep.subr.mxu0 0.0
        %383 = vmatpush1.msra.mxu0 0.0
        %384 = vmatprep.subr.mxu0 0.0
        %385 = vmatpush1.msra.mxu0 0.0
        %386 = vmatprep.subr.mxu0 0.0
        %387 = vmatpush1.msra.mxu0 0.0
        %388 = vmatprep.subr.mxu0 0.0
        %389 = vmatpush1.msra.mxu0 0.0
        %390 = vmatprep.subr.mxu0 0.0
        %391 = vmatpush1.msra.mxu0 0.0
        %392 = vmatprep.subr.mxu0 0.0
        %393 = vmatpush1.msra.mxu0 0.0
        %394 = vmatprep.subr.mxu0 0.0
        %395 = vmatpush1.msra.mxu0 0.0
        %396 = vmatprep.subr.mxu0 0.0
        %397 = vmatpush1.msra.mxu0 0.0
        %398 = vmatprep.subr.mxu0 0.0
        %399 = vmatpush1.msra.mxu0 0.0
        %400 = vmatprep.subr.mxu0 0.0
        %401 = vmatpush1.msra.mxu0 0.0
        %402 = vmatprep.subr.mxu0 0.0
        %403 = vmatpush1.msra.mxu0 0.0
        %404 = vmatprep.subr.mxu0 0.0
        %405 = vmatpush1.msra.mxu0 0.0
        %406 = vmatprep.subr.mxu0 0.0
        %407 = vmatpush1.msra.mxu0 0.0
        %408 = vmatprep.subr.mxu0 0.0
        %409 = vmatpush1.msra.mxu0 0.0
        %410 = vmatprep.subr.mxu0 0.0
        %411 = vmatpush1.msra.mxu0 0.0
        %412 = vmatprep.subr.mxu0 0.0
        %413 = vmatpush1.msra.mxu0 0.0
        %414 = vmatprep.subr.mxu0 0.0
        %415 = vmatpush1.msra.mxu0 0.0
        %416 = vmatprep.subr.mxu0 0.0
        %417 = vmatpush1.msra.mxu0 0.0
        %418 = vmatprep.subr.mxu0 0.0
        %419 = vmatpush1.msra.mxu0 0.0
        %420 = vmatprep.subr.mxu0 0.0
        %421 = vmatpush1.msra.mxu0 0.0
        %422 = vmatprep.subr.mxu0 0.0
        %423 = vmatpush1.msra.mxu0 0.0
        %424 = vmatprep.subr.mxu0 0.0
        %425 = vmatpush1.msra.mxu0 0.0
        %426 = vmatprep.subr.mxu0 0.0
        %427 = vmatpush1.msra.mxu0 0.0
        %428 = vmatprep.mubr.f32.mxu0 0.0
        %429 = vmatmul.mubr.f32.gmra.mrb[0].mxu0 %v362
        %v430 = vpop.f32.mrb[0].mxu0
        %v431 = vadd.f32 %v358, %v430
        %v432 = vpop.f32.mrb[0].mxu0
        %433 = vdwg.mxu0
        %v434 = vtanh.pop %v431
        %v435 = vld [vmem:[#allocation2] sm:$0xff]
        %v436 = vld [vmem:[#allocation2 + $0x8] sm:$0xff]
        %v437 = vld [vmem:[#allocation2 + $0x10] sm:$0xff]
        %v438 = vld [vmem:[#allocation2 + $0x18] sm:$0xff]
        %v439 = vld [vmem:[#allocation2 + $0x20] sm:$0xff]
        %v440 = vld [vmem:[#allocation2 + $0x28] sm:$0xff]
        %v441 = vld [vmem:[#allocation2 + $0x30] sm:$0xff]
        %v442 = vld [vmem:[#allocation2 + $0x38] sm:$0xff]
        %v443 = vld [vmem:[#allocation2 + $0x40] sm:$0xff]
        %v444 = vld [vmem:[#allocation2 + $0x48] sm:$0xff]
        %v445 = vld [vmem:[#allocation2 + $0x50] sm:$0xff]
        %v446 = vld [vmem:[#allocation2 + $0x58] sm:$0xff]
        %v447 = vld [vmem:[#allocation2 + $0x60] sm:$0xff]
        %v448 = vld [vmem:[#allocation2 + $0x68] sm:$0xff]
        %v449 = vld [vmem:[#allocation2 + $0x70] sm:$0xff]
        %v450 = vld [vmem:[#allocation2 + $0x78] sm:$0xff]
        %v451 = vld [vmem:[%s5] sm:$0x1]
        %v453 = vlaneseq
        %v454 = vshrl.u32 %v453, 7
        %v455 = vsub.s32 0, %v454
        %v456 = vrot.slane %v451, %v455
        %458 = vmatprep.subr.mxu0 0.0
        %459 = vmatpush1.msra.mxu0 %v435
        %460 = vmatprep.subr.mxu0 0.0
        %461 = vmatpush1.msra.mxu0 %v436
        %462 = vmatprep.subr.mxu0 0.0
        %463 = vmatpush1.msra.mxu0 %v437
        %464 = vmatprep.subr.mxu0 0.0
        %465 = vmatpush1.msra.mxu0 %v438
        %466 = vmatprep.subr.mxu0 0.0
        %467 = vmatpush1.msra.mxu0 %v439
        %468 = vmatprep.subr.mxu0 0.0
        %469 = vmatpush1.msra.mxu0 %v440
        %470 = vmatprep.subr.mxu0 0.0
        %471 = vmatpush1.msra.mxu0 %v441
        %472 = vmatprep.subr.mxu0 0.0
        %473 = vmatpush1.msra.mxu0 %v442
        %474 = vmatprep.subr.mxu0 0.0
        %475 = vmatpush1.msra.mxu0 %v443
        %476 = vmatprep.subr.mxu0 0.0
        %477 = vmatpush1.msra.mxu0 %v444
        %478 = vmatprep.subr.mxu0 0.0
        %479 = vmatpush1.msra.mxu0 %v445
        %480 = vmatprep.subr.mxu0 0.0
        %481 = vmatpush1.msra.mxu0 %v446
        %482 = vmatprep.subr.mxu0 0.0
        %483 = vmatpush1.msra.mxu0 %v447
        %484 = vmatprep.subr.mxu0 0.0
        %485 = vmatpush1.msra.mxu0 %v448
        %486 = vmatprep.subr.mxu0 0.0
        %487 = vmatpush1.msra.mxu0 %v449
        %488 = vmatprep.subr.mxu0 0.0
        %489 = vmatpush1.msra.mxu0 %v450
        %490 = vmatprep.subr.mxu0 0.0
        %491 = vmatpush1.msra.mxu0 0.0
        %492 = vmatprep.subr.mxu0 0.0
        %493 = vmatpush1.msra.mxu0 0.0
        %494 = vmatprep.subr.mxu0 0.0
        %495 = vmatpush1.msra.mxu0 0.0
        %496 = vmatprep.subr.mxu0 0.0
        %497 = vmatpush1.msra.mxu0 0.0
        %498 = vmatprep.subr.mxu0 0.0
        %499 = vmatpush1.msra.mxu0 0.0
        %500 = vmatprep.subr.mxu0 0.0
        %501 = vmatpush1.msra.mxu0 0.0
        %502 = vmatprep.subr.mxu0 0.0
        %503 = vmatpush1.msra.mxu0 0.0
        %504 = vmatprep.subr.mxu0 0.0
        %505 = vmatpush1.msra.mxu0 0.0
        %506 = vmatprep.subr.mxu0 0.0
        %507 = vmatpush1.msra.mxu0 0.0
        %508 = vmatprep.subr.mxu0 0.0
        %509 = vmatpush1.msra.mxu0 0.0
        %510 = vmatprep.subr.mxu0 0.0
        %511 = vmatpush1.msra.mxu0 0.0
        %512 = vmatprep.subr.mxu0 0.0
        %513 = vmatpush1.msra.mxu0 0.0
        %514 = vmatprep.subr.mxu0 0.0
        %515 = vmatpush1.msra.mxu0 0.0
        %516 = vmatprep.subr.mxu0 0.0
        %517 = vmatpush1.msra.mxu0 0.0
        %518 = vmatprep.subr.mxu0 0.0
        %519 = vmatpush1.msra.mxu0 0.0
        %520 = vmatprep.subr.mxu0 0.0
        %521 = vmatpush1.msra.mxu0 0.0
        %522 = vmatprep.mubr.f32.mxu0 0.0
        %523 = vmatmul.mubr.f32.gmra.mrb[0].mxu0 %v434
        %v524 = vpop.f32.mrb[0].mxu0
        %v525 = vadd.f32 %v456, %v524
        %v526 = vpop.f32.mrb[0].mxu0
        %527 = vdwg.mxu0
        %v528 = vtanh.pop %v525
        %v529 = vld [vmem:[#allocation4] sm:$0xff]
        %v530 = vld [vmem:[#allocation4 + $0x8] sm:$0xff]
        %v531 = vld [vmem:[#allocation4 + $0x10] sm:$0xff]
        %v532 = vld [vmem:[#allocation4 + $0x18] sm:$0xff]
        %v533 = vld [vmem:[#allocation4 + $0x20] sm:$0xff]
        %v534 = vld [vmem:[#allocation4 + $0x28] sm:$0xff]
        %v535 = vld [vmem:[#allocation4 + $0x30] sm:$0xff]
        %v536 = vld [vmem:[#allocation4 + $0x38] sm:$0xff]
        %v537 = vld [vmem:[#allocation4 + $0x40] sm:$0xff]
        %v538 = vld [vmem:[#allocation4 + $0x48] sm:$0xff]
        %v539 = vld [vmem:[#allocation4 + $0x50] sm:$0xff]
        %v540 = vld [vmem:[#allocation4 + $0x58] sm:$0xff]
        %v541 = vld [vmem:[#allocation4 + $0x60] sm:$0xff]
        %v542 = vld [vmem:[#allocation4 + $0x68] sm:$0xff]
        %v543 = vld [vmem:[#allocation4 + $0x70] sm:$0xff]
        %v544 = vld [vmem:[#allocation4 + $0x78] sm:$0xff]
        %v545 = vld [vmem:[%s7] sm:$0x1]
        %v547 = vlaneseq
        %v548 = vshrl.u32 %v547, 7
        %v549 = vsub.s32 0, %v548
        %v550 = vrot.slane %v545, %v549
        %552 = vmatprep.subr.mxu0 0.0
        %553 = vmatpush1.msra.mxu0 %v529
        %554 = vmatprep.subr.mxu0 0.0
        %555 = vmatpush1.msra.mxu0 %v530
        %556 = vmatprep.subr.mxu0 0.0
        %557 = vmatpush1.msra.mxu0 %v531
        %558 = vmatprep.subr.mxu0 0.0
        %559 = vmatpush1.msra.mxu0 %v532
        %560 = vmatprep.subr.mxu0 0.0
        %561 = vmatpush1.msra.mxu0 %v533
        %562 = vmatprep.subr.mxu0 0.0
        %563 = vmatpush1.msra.mxu0 %v534
        %564 = vmatprep.subr.mxu0 0.0
        %565 = vmatpush1.msra.mxu0 %v535
        %566 = vmatprep.subr.mxu0 0.0
        %567 = vmatpush1.msra.mxu0 %v536
        %568 = vmatprep.subr.mxu0 0.0
        %569 = vmatpush1.msra.mxu0 %v537
        %570 = vmatprep.subr.mxu0 0.0
        %571 = vmatpush1.msra.mxu0 %v538
        %572 = vmatprep.subr.mxu0 0.0
        %573 = vmatpush1.msra.mxu0 %v539
        %574 = vmatprep.subr.mxu0 0.0
        %575 = vmatpush1.msra.mxu0 %v540
        %576 = vmatprep.subr.mxu0 0.0
        %577 = vmatpush1.msra.mxu0 %v541
        %578 = vmatprep.subr.mxu0 0.0
        %579 = vmatpush1.msra.mxu0 %v542
        %580 = vmatprep.subr.mxu0 0.0
        %581 = vmatpush1.msra.mxu0 %v543
        %582 = vmatprep.subr.mxu0 0.0
        %583 = vmatpush1.msra.mxu0 %v544
        %584 = vmatprep.subr.mxu0 0.0
        %585 = vmatpush1.msra.mxu0 0.0
        %586 = vmatprep.subr.mxu0 0.0
        %587 = vmatpush1.msra.mxu0 0.0
        %588 = vmatprep.subr.mxu0 0.0
        %589 = vmatpush1.msra.mxu0 0.0
        %590 = vmatprep.subr.mxu0 0.0
        %591 = vmatpush1.msra.mxu0 0.0
        %592 = vmatprep.subr.mxu0 0.0
        %593 = vmatpush1.msra.mxu0 0.0
        %594 = vmatprep.subr.mxu0 0.0
        %595 = vmatpush1.msra.mxu0 0.0
        %596 = vmatprep.subr.mxu0 0.0
        %597 = vmatpush1.msra.mxu0 0.0
        %598 = vmatprep.subr.mxu0 0.0
        %599 = vmatpush1.msra.mxu0 0.0
        %600 = vmatprep.subr.mxu0 0.0
        %601 = vmatpush1.msra.mxu0 0.0
        %602 = vmatprep.subr.mxu0 0.0
        %603 = vmatpush1.msra.mxu0 0.0
        %604 = vmatprep.subr.mxu0 0.0
        %605 = vmatpush1.msra.mxu0 0.0
        %606 = vmatprep.subr.mxu0 0.0
        %607 = vmatpush1.msra.mxu0 0.0
        %608 = vmatprep.subr.mxu0 0.0
        %609 = vmatpush1.msra.mxu0 0.0
        %610 = vmatprep.subr.mxu0 0.0
        %611 = vmatpush1.msra.mxu0 0.0
        %612 = vmatprep.subr.mxu0 0.0
        %613 = vmatpush1.msra.mxu0 0.0
        %614 = vmatprep.subr.mxu0 0.0
        %615 = vmatpush1.msra.mxu0 0.0
        %616 = vmatprep.mubr.f32.mxu0 0.0
        %617 = vmatmul.mubr.f32.gmra.mrb[0].mxu0 %v528
        %v618 = vpop.f32.mrb[0].mxu0
        %v619 = vadd.f32 %v550, %v618
        %v620 = vpop.f32.mrb[0].mxu0
        %621 = vdwg.mxu0
        %v622 = vld [vmem:[%s343] sm:$0xff]
        %vm623 = vcmp.gt.f32.partialorder %v622, 0.0
        %v624 = vsel %vm623, 0.0, -3.4028235e+38
        %vm625 = vcmask 64512
        %v626 = vsel %vm625, %v624, 0.0
        %v627 = vadd.f32 %v619, %v626
        %628 = vst [vmem:[%s347] sm:$0xff] %v627
        %p629 = scmp.lt.s32.totalorder %s21, 1
        %s630 = scalar_select %p629, %s21, 1
        %s631 = smul.addr %s630, 8
        %s632 = scalar_lea.vmem %s8, %s631
        // Predicated region
        $region61: #{_lambda_.1} parent=51 // pred_check
          %p633 = pneg %p217
        $region62: #{_lambda_.1} parent=51 // pred_check_branch
          %635 = sbr.rel (%p633) target = $region64
        $region63: #{_lambda_.1} parent=51 // pred_region
          _
        $region64: #{_lambda_.1} parent=51 // pred_fallthru
          _
      $region52: #{_lambda_.1} parent=5 // pred_fallthru
        _
      %p636 = scmp.le.s32.totalorder 2, %s16
      // Predicated region
      $region65: #{_lambda_.1} parent=5 // pred_check
        %p637 = pneg %p636
      $region66: #{_lambda_.1} parent=5 // pred_check_branch
        %639 = sbr.rel (%p637) target = $region68
      $region67: #{_lambda_.1} parent=5 // pred_region
        %s640 = ssub.s32 %s16, 2
        // Predicated region
        $region69: #{_lambda_.1} parent=67 // pred_check
          %p641 = pneg %p223
        $region70: #{_lambda_.1} parent=67 // pred_check_branch
          %643 = sbr.rel (%p641) target = $region72
        $region71: #{_lambda_.1} parent=67 // pred_region
          %p644 = scmp.lt.s32.totalorder %s22, 1
          %s645 = scalar_select %p644, %s22, 1
          %s646 = smul.addr %s645, 8
          %s647 = scalar_lea.vmem %s8, %s646
        $region72: #{_lambda_.1} parent=67 // pred_fallthru
          _
      $region68: #{_lambda_.1} parent=5 // pred_fallthru
        _
    $region6: #{_lambda_.1} parent=1 // loop_footer
      %s20 = sadd.s32 1, %s16
    $region7: #{_lambda_.1} parent=1 // loop_footer_branch
      %15 = sbr.rel target = $region3
    $region8: #{_lambda_.1} parent=1 // loop_exit
      _
    %648 = vsyncpa [#allocation3], 1
    %s649 = scalar_lea.sflag [#allocation3], 1
    %650 = vsyncpa %s649, 1
    %651 = vsyncpa [#allocation5], 1

</llo_original>
